<compile_context>
chip_gen: v7x
topology: tpu7x:2x2x1
jax: 0.10.0
libtpu: 0.0.40
codegen_flags: <defaults>
</compile_context>

<pallas_src>
import jax
import jax.numpy as jnp
from jax import lax
from jax.experimental import pallas as pl
from jax.experimental.pallas import tpu as pltpu

EPS = 1e-12


def _make_affinity_kernel(eps, has_mask, chunk_n, chunks_per_split, n_samples):
    """Kernel accumulating the three grams VDV / YDY / VDY over sample chunks."""

    def kernel(*refs):
        if has_mask:
            v_ref, y_ref, ys_ref, m_ref, vdv_ref, ydy_ref, vdy_ref = refs
        else:
            v_ref, y_ref, ys_ref, vdv_ref, ydy_ref, vdy_ref = refs

        p = pl.program_id(0)   # parallel split of the sample-chunk axis
        k = pl.program_id(2)   # chunk within this split (reduction axis, last)

        @pl.when(k == 0)
        def _():
            vdv_ref[...] = jnp.zeros_like(vdv_ref)
            ydy_ref[...] = jnp.zeros_like(ydy_ref)
            vdy_ref[...] = jnp.zeros_like(vdy_ref)

        # Valid rows of this chunk.  rem <= 0 for redundant (clamped) chunk
        # slots of the parallel split and for fully out-of-bounds tails.
        g = p * chunks_per_split + k
        rem = n_samples - g * chunk_n
        valid = lax.broadcasted_iota(jnp.int32, (chunk_n, 1), 0) < rem

        # Blocks stay in their input dtype (bf16 -> bf16 MXU feed).  The
        # select zeroes invalid rows exactly, so OOB garbage (even NaN)
        # cannot reach the accumulators through either dot operand.
        Vb = jnp.where(valid, v_ref[0], 0)                     # (cN, E1)
        Yb = jnp.where(valid, y_ref[0], 0)                     # (cN, E2)

        # q[n] = sum_e Y[n, e] * Ysum[e]   (f32; E2 is small)
        q = jnp.sum(Yb.astype(jnp.float32) * ys_ref[0], axis=1,
                    keepdims=True)                             # (cN, 1)

        if has_mask:
            m = jnp.where(valid, m_ref[0], 0.0)                # (cN, 1) f32
            # w = mask^2 * 1/sqrt(mask*q + eps): algebraically identical to
            # masking both bmm operands; mask kept inside the rsqrt argument
            # exactly as in the reference (eps placement preserved).
            w = (m * m) * lax.rsqrt(m * q + eps)               # (cN, 1) f32
        else:
            w = jnp.where(valid, lax.rsqrt(q + eps), 0.0)      # (cN, 1) f32

        wV = w.astype(Vb.dtype) * Vb                           # (cN, E1)
        wY = w.astype(Yb.dtype) * Yb                           # (cN, E2)

        # Contract the sample (sublane) axis on the MXU; accumulate in the
        # f32 output blocks resident across the reduction axis.
        dn = (((0,), (0,)), ((), ()))
        vdv_ref[0, 0] += lax.dot_general(wV, Vb, dn,
                                         preferred_element_type=jnp.float32)
        ydy_ref[0, 0] += lax.dot_general(wY, Yb, dn,
                                         preferred_element_type=jnp.float32)
        if Vb.dtype == Yb.dtype:
            lhs, rhs = wV, Yb
        else:
            cd = jnp.promote_types(Vb.dtype, Yb.dtype)
            lhs, rhs = wV.astype(cd), Yb.astype(cd)
        vdy_ref[0, 0] += lax.dot_general(lhs, rhs, dn,
                                         preferred_element_type=jnp.float32)

    return kernel


def _choose_chunk(n_samples, itemsize):
    """Sample-chunk size: VMEM sees cN x 128 x itemsize per buffer (lane pad
    of the small embed dim), so keep the double-buffered working set well
    under the smallest scoped-VMEM default (v5e: 16 MiB) while amortizing the
    ~0.35 us per-grid-step overhead."""
    # TODO(synk): branch per chip with pltpu.get_tpu_info() (larger chunks on
    # v7x's 3.2 TB/s HBM, smaller on v5e) instead of one conservative choice.
    c = 4096 if itemsize <= 2 else 2048
    return min(c, n_samples)


def affinity_loss(inp, target, binary_mask=None, batch_mean=True,
                  eps=EPS, chunk_n=None, num_splits=None):
    """Pallas implementation of AffinityLoss.forward.

    Args:
      inp:    (B, N, E1) array ("input" / V)
      target: (B, N, E2) array ("target" / Y)
      binary_mask: optional (B, N)
      batch_mean: if True return scalar mean over batch, else (B,)
      chunk_n: optional explicit N-chunk (multiple of 128, or >= N)
      num_splits: optional parallel split count of the chunk axis (megacore)
    """
    B, N, E1 = inp.shape
    Bt, Nt, E2 = target.shape
    assert (Bt, Nt) == (B, N), "input/target batch or sample dims mismatch"
    has_mask = binary_mask is not None

    itemsize = max(jnp.dtype(inp.dtype).itemsize,
                   jnp.dtype(target.dtype).itemsize)
    if chunk_n is None:
        cN = _choose_chunk(N, itemsize)
    else:
        cN = min(int(chunk_n), N)
        assert cN == N or cN % 128 == 0, \
            "chunk_n must be >= n_samples or a multiple of 128"
    nk = pl.cdiv(N, cN)

    # Split the chunk (reduction) axis across cores when the batch axis alone
    # cannot feed both TensorCores (v7x megacore with B == 1).
    if num_splits is None:
        P = 2 if (B == 1 and nk >= 2) else 1
    else:
        P = max(1, int(num_splits))
    cps = pl.cdiv(nk, P)                     # chunks per parallel split

    # Ysum = sum_n (mask * Y), computed WITHOUT materializing mask*Y.
    if has_mask:
        ysum = jnp.einsum('bn,bne->be', binary_mask.astype(target.dtype),
                          target, preferred_element_type=jnp.float32)
    else:
        ysum = jnp.sum(target, axis=1, dtype=jnp.float32)
    ysum = ysum.astype(jnp.float32).reshape(B, 1, E2)

    kernel = _make_affinity_kernel(float(eps), has_mask, cN, cps, N)

    def chunk_map(p, b, k):
        # Clamp redundant (p, k) slots onto the last real chunk; the kernel
        # zeroes their contribution through the valid-row mask.
        return (b, jnp.minimum(p * cps + k, nk - 1), 0)

    in_specs = [
        pl.BlockSpec((1, cN, E1), chunk_map),                    # V (natural)
        pl.BlockSpec((1, cN, E2), chunk_map),                    # Y (natural)
        pl.BlockSpec((1, 1, E2), lambda p, b, k: (b, 0, 0)),     # Ysum (f32)
    ]
    args = [inp, target, ysum]
    if has_mask:
        in_specs.append(pl.BlockSpec((1, cN, 1), chunk_map))     # mask column
        args.append(binary_mask.astype(jnp.float32).reshape(B, N, 1))

    out_specs = (
        pl.BlockSpec((1, 1, E1, E1), lambda p, b, k: (p, b, 0, 0)),
        pl.BlockSpec((1, 1, E2, E2), lambda p, b, k: (p, b, 0, 0)),
        pl.BlockSpec((1, 1, E1, E2), lambda p, b, k: (p, b, 0, 0)),
    )
    out_shape = (
        jax.ShapeDtypeStruct((P, B, E1, E1), jnp.float32),
        jax.ShapeDtypeStruct((P, B, E2, E2), jnp.float32),
        jax.ShapeDtypeStruct((P, B, E1, E2), jnp.float32),
    )

    bytes_in = (inp.size * jnp.dtype(inp.dtype).itemsize
                + target.size * jnp.dtype(target.dtype).itemsize
                + (B * N * 4 if has_mask else 0))
    cost = pl.CostEstimate(
        flops=int(2 * B * N * (E1 * E1 + E1 * E2 + E2 * E2 + E2)),
        transcendentals=int(B * N),
        bytes_accessed=int(bytes_in))

    vdv_p, ydy_p, vdy_p = pl.pallas_call(
        kernel,
        out_shape=out_shape,
        grid_spec=pltpu.PrefetchScalarGridSpec(
            num_scalar_prefetch=0,
            grid=(P, B, cps),
            in_specs=in_specs,
            out_specs=out_specs),
        compiler_params=pltpu.CompilerParams(
            dimension_semantics=("parallel", "parallel", "arbitrary"),
            vmem_limit_bytes=32 * 1024 * 1024),
        cost_estimate=cost,
    )(*args)

    # Tiny O(B*E^2) epilogue in XLA: merge the split partial grams (BEFORE
    # squaring) and form the loss.
    VDV = jnp.sum(vdv_p, axis=0)
    YDY = jnp.sum(ydy_p, axis=0)
    VDY = jnp.sum(vdy_p, axis=0)
    per_batch = (jnp.sum(VDV * VDV, axis=(1, 2))
                 + jnp.sum(YDY * YDY, axis=(1, 2))
                 - 2.0 * jnp.sum(VDY * VDY, axis=(1, 2)))

    if batch_mean:
        return jnp.mean(per_batch)
    return per_batch


def _affinity_loss_ref(V, Y, binary_mask=None, batch_mean=True):
    """Pure-JAX reference mirroring the PyTorch forward exactly."""
    if binary_mask is not None:
        V = binary_mask[..., None] * V
        Y = binary_mask[..., None] * Y
    Ysum = jnp.sum(Y, axis=1, keepdims=True)               # (B, 1, E2)
    YY1 = jnp.sum(Y * Ysum, axis=2)                        # (B, N)
    D = 1.0 / jnp.sqrt(YY1 + EPS)                          # (B, N)
    trans_V = jnp.transpose(V, (0, 2, 1))                  # (B, E1, N)
    trans_Y = jnp.transpose(Y, (0, 2, 1))                  # (B, E2, N)
    VD = trans_V * D[:, None, :]
    YD = trans_Y * D[:, None, :]
    VDV = jnp.einsum('ben,bnf->bef', VD, V, precision='highest')
    YDY = jnp.einsum('ben,bnf->bef', YD, Y, precision='highest')
    VDY = jnp.einsum('ben,bnf->bef', VD, Y, precision='highest')
    loss = (jnp.sum(VDV ** 2, axis=(1, 2))
            + jnp.sum(YDY ** 2, axis=(1, 2))
            - 2.0 * jnp.sum(VDY ** 2, axis=(1, 2)))
    if batch_mean:
        loss = jnp.mean(loss, axis=0)
    return loss


if __name__ == "__main__":
    key = jax.random.PRNGKey(0)
    k1, k2, k3 = jax.random.split(key, 3)

    B, N, E1, E2 = 2, 16, 32, 4   # batch, n_samples, embed_dim1, embed_dim2

    V = jax.random.normal(k1, (B, N, E1), dtype=jnp.float32)
    Y = jax.nn.sigmoid(jax.random.normal(k2, (B, N, E2), dtype=jnp.float32))
    binary_mask = (jax.random.uniform(k3, (B, N)) > 0.2).astype(jnp.float32)

    # 1) masked + batch_mean path (single full-N chunk)
    out = jax.block_until_ready(
        affinity_loss(V, Y, binary_mask=binary_mask, batch_mean=True))
    ref = jax.block_until_ready(
        _affinity_loss_ref(V, Y, binary_mask=binary_mask, batch_mean=True))
    assert jnp.allclose(out, ref, rtol=2e-3, atol=2e-3), (out, ref)

    # 2) no-mask / per-batch path (specialized kernel without the mask input)
    out_pb = jax.block_until_ready(affinity_loss(V, Y, batch_mean=False))
    ref_pb = _affinity_loss_ref(V, Y, batch_mean=False)
    assert jnp.allclose(out_pb, ref_pb, rtol=2e-3, atol=2e-3), (out_pb, ref_pb)

    # 3) multi-chunk accumulation + in-kernel tail masking (N % chunk != 0)
    N2 = 300
    k4, k5, k6 = jax.random.split(jax.random.PRNGKey(1), 3)
    V2 = jax.random.normal(k4, (B, N2, E1), dtype=jnp.float32)
    Y2 = jax.nn.sigmoid(jax.random.normal(k5, (B, N2, E2), dtype=jnp.float32))
    m2 = (jax.random.uniform(k6, (B, N2)) > 0.2).astype(jnp.float32)
    out2 = jax.block_until_ready(
        affinity_loss(V2, Y2, binary_mask=m2, batch_mean=False, chunk_n=128))
    ref2 = _affinity_loss_ref(V2, Y2, binary_mask=m2, batch_mean=False)
    assert jnp.allclose(out2, ref2, rtol=2e-3, atol=2e-3), (out2, ref2)

    # 4) B == 1: exercises the 2-way parallel split of the chunk axis
    #    (v7x megacore path, incl. a clamped redundant chunk slot).
    out3 = jax.block_until_ready(
        affinity_loss(V2[:1], Y2[:1], binary_mask=m2[:1], batch_mean=False,
                      chunk_n=128))
    ref3 = _affinity_loss_ref(V2[:1], Y2[:1], binary_mask=m2[:1],
                              batch_mean=False)
    assert jnp.allclose(out3, ref3, rtol=2e-3, atol=2e-3), (out3, ref3)

    # 5) bf16 inputs: bf16 MXU feed with f32 accumulation (looser tolerance),
    #    with a partial tail chunk.
    N3 = 200
    k7, k8, k9 = jax.random.split(jax.random.PRNGKey(2), 3)
    V3 = jax.random.normal(k7, (B, N3, E1), dtype=jnp.bfloat16)
    Y3 = jax.nn.sigmoid(
        jax.random.normal(k8, (B, N3, E2), dtype=jnp.float32)).astype(jnp.bfloat16)
    m3 = (jax.random.uniform(k9, (B, N3)) > 0.2).astype(jnp.float32)
    out4 = jax.block_until_ready(
        affinity_loss(V3, Y3, binary_mask=m3, batch_mean=False, chunk_n=128))
    ref4 = _affinity_loss_ref(V3.astype(jnp.float32), Y3.astype(jnp.float32),
                              binary_mask=m3, batch_mean=False)
    assert jnp.allclose(out4, ref4, rtol=1e-1, atol=1.0), (out4, ref4)

    print("KERNEL_OK")
</pallas_src>

<mosaic_0001>
module attributes {stable_mosaic.version = 11 : i64} {
  func.func @kernel(%arg0: i32, %arg1: i32, %arg2: i32, %arg3: memref<1x16x32xf32, #tpu.memory_space<vmem>>, %arg4: memref<1x16x4xf32, #tpu.memory_space<vmem>>, %arg5: memref<1x1x4xf32, #tpu.memory_space<vmem>>, %arg6: memref<1x16x1xf32, #tpu.memory_space<vmem>>, %arg7: memref<1x1x32x32xf32, #tpu.memory_space<vmem>>, %arg8: memref<1x1x4x4xf32, #tpu.memory_space<vmem>>, %arg9: memref<1x1x32x4xf32, #tpu.memory_space<vmem>>) attributes {dimension_semantics = [#tpu.dimension_semantics<parallel>, #tpu.dimension_semantics<parallel>, #tpu.dimension_semantics<arbitrary>], iteration_bounds = array<i64: 1, 2, 1>, scalar_prefetch = 0 : i64, scratch_operands = 0 : i64, tpu.core_type = #tpu.core_type<tc>, window_params = [{transform_indices = @transform_0, window_bounds = array<i64: 1, 16, 32>}, {transform_indices = @transform_1, window_bounds = array<i64: 1, 16, 4>}, {transform_indices = @transform_2, window_bounds = array<i64: 1, 1, 4>}, {transform_indices = @transform_3, window_bounds = array<i64: 1, 16, 1>}, {transform_indices = @transform_4, window_bounds = array<i64: 1, 1, 32, 32>}, {transform_indices = @transform_5, window_bounds = array<i64: 1, 1, 4, 4>}, {transform_indices = @transform_6, window_bounds = array<i64: 1, 1, 32, 4>}]} {
    %c0_i32 = arith.constant 0 : i32
    %0 = arith.cmpi eq, %arg2, %c0_i32 : i32
    %1 = arith.extui %0 : i1 to i32
    %c0_i32_0 = arith.constant 0 : i32
    %2 = arith.cmpi ne, %1, %c0_i32_0 : i32
    scf.if %2 {
      %cst_44 = arith.constant 0.000000e+00 : f32
      %65 = vector.broadcast %cst_44 : f32 to vector<1x1x32x32xf32>
      %c0_45 = arith.constant 0 : index
      %c0_46 = arith.constant 0 : index
      %c0_47 = arith.constant 0 : index
      %c0_48 = arith.constant 0 : index
      %66 = vector.load %arg7[%c0_45, %c0_46, %c0_47, %c0_48] : memref<1x1x32x32xf32, #tpu.memory_space<vmem>>, vector<1x1x32x32xf32>
      tpu.vector_store %arg7[%c0_45, %c0_46, %c0_47, %c0_48], %65 {strides = array<i32>} : memref<1x1x32x32xf32, #tpu.memory_space<vmem>>, vector<1x1x32x32xf32>,
      %cst_49 = arith.constant 0.000000e+00 : f32
      %67 = vector.broadcast %cst_49 : f32 to vector<1x1x4x4xf32>
      %c0_50 = arith.constant 0 : index
      %c0_51 = arith.constant 0 : index
      %c0_52 = arith.constant 0 : index
      %c0_53 = arith.constant 0 : index
      %68 = vector.load %arg8[%c0_50, %c0_51, %c0_52, %c0_53] : memref<1x1x4x4xf32, #tpu.memory_space<vmem>>, vector<1x1x4x4xf32>
      tpu.vector_store %arg8[%c0_50, %c0_51, %c0_52, %c0_53], %67 {strides = array<i32>} : memref<1x1x4x4xf32, #tpu.memory_space<vmem>>, vector<1x1x4x4xf32>,
      %cst_54 = arith.constant 0.000000e+00 : f32
      %69 = vector.broadcast %cst_54 : f32 to vector<1x1x32x4xf32>
      %c0_55 = arith.constant 0 : index
      %c0_56 = arith.constant 0 : index
      %c0_57 = arith.constant 0 : index
      %c0_58 = arith.constant 0 : index
      %70 = vector.load %arg9[%c0_55, %c0_56, %c0_57, %c0_58] : memref<1x1x32x4xf32, #tpu.memory_space<vmem>>, vector<1x1x32x4xf32>
      tpu.vector_store %arg9[%c0_55, %c0_56, %c0_57, %c0_58], %69 {strides = array<i32>} : memref<1x1x32x4xf32, #tpu.memory_space<vmem>>, vector<1x1x32x4xf32>,
    } else {
    }
    %c1_i32 = arith.constant 1 : i32
    %3 = arith.muli %arg0, %c1_i32 : i32
    %4 = arith.addi %3, %arg2 : i32
    %c16_i32 = arith.constant 16 : i32
    %5 = arith.muli %4, %c16_i32 : i32
    %c16_i32_1 = arith.constant 16 : i32
    %6 = arith.subi %c16_i32_1, %5 : i32
    %7 = tpu.iota {dimensions = array<i32: 0>} : vector<16x1xi32>
    %8 = vector.broadcast %6 : i32 to vector<16x1xi32>
    %9 = arith.cmpi slt, %7, %8 : vector<16x1xi32>
    %c0 = arith.constant 0 : index
    %c0_2 = arith.constant 0 : index
    %c0_3 = arith.constant 0 : index
    %10 = vector.load %arg3[%c0, %c0_2, %c0_3] : memref<1x16x32xf32, #tpu.memory_space<vmem>>, vector<1x16x32xf32>
    %11 = vector.shape_cast %10 : vector<1x16x32xf32> to vector<16x32xf32>
    %c0_i32_4 = arith.constant 0 : i32
    %12 = arith.sitofp %c0_i32_4 : i32 to f32
    %13 = vector.shape_cast %9 : vector<16x1xi1> to vector<16x1xi1>
    %14 = vector.broadcast %13 : vector<16x1xi1> to vector<16x32xi1>
    %15 = vector.broadcast %12 : f32 to vector<16x32xf32>
    %16 = arith.select %14, %11, %15 : vector<16x32xi1>, vector<16x32xf32>
    %c0_5 = arith.constant 0 : index
    %c0_6 = arith.constant 0 : index
    %c0_7 = arith.constant 0 : index
    %17 = vector.load %arg4[%c0_5, %c0_6, %c0_7] : memref<1x16x4xf32, #tpu.memory_space<vmem>>, vector<1x16x4xf32>
    %18 = vector.shape_cast %17 : vector<1x16x4xf32> to vector<16x4xf32>
    %c0_i32_8 = arith.constant 0 : i32
    %19 = arith.sitofp %c0_i32_8 : i32 to f32
    %20 = vector.shape_cast %9 : vector<16x1xi1> to vector<16x1xi1>
    %21 = vector.broadcast %20 : vector<16x1xi1> to vector<16x4xi1>
    %22 = vector.broadcast %19 : f32 to vector<16x4xf32>
    %23 = arith.select %21, %18, %22 : vector<16x4xi1>, vector<16x4xf32>
    %c0_9 = arith.constant 0 : index
    %c0_10 = arith.constant 0 : index
    %c0_11 = arith.constant 0 : index
    %24 = vector.load %arg5[%c0_9, %c0_10, %c0_11] : memref<1x1x4xf32, #tpu.memory_space<vmem>>, vector<1x1x4xf32>
    %25 = vector.shape_cast %24 : vector<1x1x4xf32> to vector<1x4xf32>
    %26 = vector.broadcast %25 : vector<1x4xf32> to vector<16x4xf32>
    %27 = arith.mulf %23, %26 : vector<16x4xf32>
    %cst = arith.constant dense<0.000000e+00> : vector<16xf32>
    %28 = vector.multi_reduction <add>, %27, %cst [1] : vector<16x4xf32> to vector<16xf32>
    %29 = vector.shape_cast %28 : vector<16xf32> to vector<16x1xf32>
    %c0_12 = arith.constant 0 : index
    %c0_13 = arith.constant 0 : index
    %c0_14 = arith.constant 0 : index
    %30 = vector.load %arg6[%c0_12, %c0_13, %c0_14] : memref<1x16x1xf32, #tpu.memory_space<vmem>>, vector<1x16x1xf32>
    %31 = vector.shape_cast %30 : vector<1x16x1xf32> to vector<16x1xf32>
    %cst_15 = arith.constant 0.000000e+00 : f32
    %32 = vector.broadcast %cst_15 : f32 to vector<16x1xf32>
    %33 = arith.select %9, %31, %32 : vector<16x1xi1>, vector<16x1xf32>
    %34 = arith.mulf %33, %33 : vector<16x1xf32>
    %35 = arith.mulf %33, %29 : vector<16x1xf32>
    %cst_16 = arith.constant 9.99999996E-13 : f32
    %36 = vector.broadcast %cst_16 : f32 to vector<16x1xf32>
    %37 = arith.addf %35, %36 : vector<16x1xf32>
    %38 = math.rsqrt %37 : vector<16x1xf32>
    %39 = arith.mulf %34, %38 : vector<16x1xf32>
    %40 = vector.broadcast %39 : vector<16x1xf32> to vector<16x32xf32>
    %41 = arith.mulf %40, %16 : vector<16x32xf32>
    %42 = vector.broadcast %39 : vector<16x1xf32> to vector<16x4xf32>
    %43 = arith.mulf %42, %23 : vector<16x4xf32>
    %c0_17 = arith.constant 0 : index
    %c0_18 = arith.constant 0 : index
    %c0_19 = arith.constant 0 : index
    %c0_20 = arith.constant 0 : index
    %44 = vector.load %arg7[%c0_17, %c0_18, %c0_19, %c0_20] : memref<1x1x32x32xf32, #tpu.memory_space<vmem>>, vector<1x1x32x32xf32>
    %45 = vector.shape_cast %44 : vector<1x1x32x32xf32> to vector<32x32xf32>
    %cst_21 = arith.constant dense<0.000000e+00> : vector<32x32xf32>
    %46 = tpu.matmul %41, %16, %cst_21 {dimension_numbers = #tpu.dot_dimension_numbers<[0], [0], [1], [1], [0, 1, 1, 1], [], []>} : vector<16x32xf32>, vector<16x32xf32>, vector<32x32xf32> -> vector<32x32xf32>
    %47 = arith.addf %45, %46 : vector<32x32xf32>
    %c0_22 = arith.constant 0 : index
    %c0_23 = arith.constant 0 : index
    %c0_24 = arith.constant 0 : index
    %c0_25 = arith.constant 0 : index
    %48 = vector.load %arg7[%c0_22, %c0_23, %c0_24, %c0_25] : memref<1x1x32x32xf32, #tpu.memory_space<vmem>>, vector<1x1x32x32xf32>
    %49 = vector.shape_cast %48 : vector<1x1x32x32xf32> to vector<32x32xf32>
    %50 = vector.shape_cast %47 : vector<32x32xf32> to vector<1x1x32x32xf32>
    tpu.vector_store %arg7[%c0_22, %c0_23, %c0_24, %c0_25], %50 {strides = array<i32>} : memref<1x1x32x32xf32, #tpu.memory_space<vmem>>, vector<1x1x32x32xf32>,
    %c0_26 = arith.constant 0 : index
    %c0_27 = arith.constant 0 : index
    %c0_28 = arith.constant 0 : index
    %c0_29 = arith.constant 0 : index
    %51 = vector.load %arg8[%c0_26, %c0_27, %c0_28, %c0_29] : memref<1x1x4x4xf32, #tpu.memory_space<vmem>>, vector<1x1x4x4xf32>
    %52 = vector.shape_cast %51 : vector<1x1x4x4xf32> to vector<4x4xf32>
    %cst_30 = arith.constant dense<0.000000e+00> : vector<4x4xf32>
    %53 = tpu.matmul %43, %23, %cst_30 {dimension_numbers = #tpu.dot_dimension_numbers<[0], [0], [1], [1], [0, 1, 1, 1], [], []>} : vector<16x4xf32>, vector<16x4xf32>, vector<4x4xf32> -> vector<4x4xf32>
    %54 = arith.addf %52, %53 : vector<4x4xf32>
    %c0_31 = arith.constant 0 : index
    %c0_32 = arith.constant 0 : index
    %c0_33 = arith.constant 0 : index
    %c0_34 = arith.constant 0 : index
    %55 = vector.load %arg8[%c0_31, %c0_32, %c0_33, %c0_34] : memref<1x1x4x4xf32, #tpu.memory_space<vmem>>, vector<1x1x4x4xf32>
    %56 = vector.shape_cast %55 : vector<1x1x4x4xf32> to vector<4x4xf32>
    %57 = vector.shape_cast %54 : vector<4x4xf32> to vector<1x1x4x4xf32>
    tpu.vector_store %arg8[%c0_31, %c0_32, %c0_33, %c0_34], %57 {strides = array<i32>} : memref<1x1x4x4xf32, #tpu.memory_space<vmem>>, vector<1x1x4x4xf32>,
    %c0_35 = arith.constant 0 : index
    %c0_36 = arith.constant 0 : index
    %c0_37 = arith.constant 0 : index
    %c0_38 = arith.constant 0 : index
    %58 = vector.load %arg9[%c0_35, %c0_36, %c0_37, %c0_38] : memref<1x1x32x4xf32, #tpu.memory_space<vmem>>, vector<1x1x32x4xf32>
    %59 = vector.shape_cast %58 : vector<1x1x32x4xf32> to vector<32x4xf32>
    %cst_39 = arith.constant dense<0.000000e+00> : vector<32x4xf32>
    %60 = tpu.matmul %41, %23, %cst_39 {dimension_numbers = #tpu.dot_dimension_numbers<[0], [0], [1], [1], [0, 1, 1, 1], [], []>} : vector<16x32xf32>, vector<16x4xf32>, vector<32x4xf32> -> vector<32x4xf32>
    %61 = arith.addf %59, %60 : vector<32x4xf32>
    %c0_40 = arith.constant 0 : index
    %c0_41 = arith.constant 0 : index
    %c0_42 = arith.constant 0 : index
    %c0_43 = arith.constant 0 : index
    %62 = vector.load %arg9[%c0_40, %c0_41, %c0_42, %c0_43] : memref<1x1x32x4xf32, #tpu.memory_space<vmem>>, vector<1x1x32x4xf32>
    %63 = vector.shape_cast %62 : vector<1x1x32x4xf32> to vector<32x4xf32>
    %64 = vector.shape_cast %61 : vector<32x4xf32> to vector<1x1x32x4xf32>
    tpu.vector_store %arg9[%c0_40, %c0_41, %c0_42, %c0_43], %64 {strides = array<i32>} : memref<1x1x32x4xf32, #tpu.memory_space<vmem>>, vector<1x1x32x4xf32>,
    return
  }
  func.func @transform_0(%arg0: i32, %arg1: i32, %arg2: i32) -> (i32, i32, i32) {
    %c1_i32 = arith.constant 1 : i32
    %0 = arith.muli %arg0, %c1_i32 : i32
    %1 = arith.addi %0, %arg2 : i32
    %c0_i32 = arith.constant 0 : i32
    %2 = arith.minsi %1, %c0_i32 : i32
    %c0_i32_0 = arith.constant 0 : i32
    %c0_i32_1 = arith.constant 0 : i32
    return %arg1, %2, %c0_i32_0 : i32, i32, i32
  }
  func.func @transform_1(%arg0: i32, %arg1: i32, %arg2: i32) -> (i32, i32, i32) {
    %c1_i32 = arith.constant 1 : i32
    %0 = arith.muli %arg0, %c1_i32 : i32
    %1 = arith.addi %0, %arg2 : i32
    %c0_i32 = arith.constant 0 : i32
    %2 = arith.minsi %1, %c0_i32 : i32
    %c0_i32_0 = arith.constant 0 : i32
    %c0_i32_1 = arith.constant 0 : i32
    return %arg1, %2, %c0_i32_0 : i32, i32, i32
  }
  func.func @transform_2(%arg0: i32, %arg1: i32, %arg2: i32) -> (i32, i32, i32) {
    %c0_i32 = arith.constant 0 : i32
    %c0_i32_0 = arith.constant 0 : i32
    %c0_i32_1 = arith.constant 0 : i32
    return %arg1, %c0_i32, %c0_i32_0 : i32, i32, i32
  }
  func.func @transform_3(%arg0: i32, %arg1: i32, %arg2: i32) -> (i32, i32, i32) {
    %c1_i32 = arith.constant 1 : i32
    %0 = arith.muli %arg0, %c1_i32 : i32
    %1 = arith.addi %0, %arg2 : i32
    %c0_i32 = arith.constant 0 : i32
    %2 = arith.minsi %1, %c0_i32 : i32
    %c0_i32_0 = arith.constant 0 : i32
    %c0_i32_1 = arith.constant 0 : i32
    return %arg1, %2, %c0_i32_0 : i32, i32, i32
  }
  func.func @transform_4(%arg0: i32, %arg1: i32, %arg2: i32) -> (i32, i32, i32, i32) {
    %c0_i32 = arith.constant 0 : i32
    %c0_i32_0 = arith.constant 0 : i32
    %c0_i32_1 = arith.constant 0 : i32
    return %arg0, %arg1, %c0_i32, %c0_i32_0 : i32, i32, i32, i32
  }
  func.func @transform_5(%arg0: i32, %arg1: i32, %arg2: i32) -> (i32, i32, i32, i32) {
    %c0_i32 = arith.constant 0 : i32
    %c0_i32_0 = arith.constant 0 : i32
    %c0_i32_1 = arith.constant 0 : i32
    return %arg0, %arg1, %c0_i32, %c0_i32_0 : i32, i32, i32, i32
  }
  func.func @transform_6(%arg0: i32, %arg1: i32, %arg2: i32) -> (i32, i32, i32, i32) {
    %c0_i32 = arith.constant 0 : i32
    %c0_i32_0 = arith.constant 0 : i32
    %c0_i32_1 = arith.constant 0 : i32
    return %arg0, %arg1, %c0_i32, %c0_i32_0 : i32, i32, i32, i32
  }
}

</mosaic_0001>

<llo_original>
// kernel: tpu_custom_call.1
$region0: #{tpu_custom_call.1}
  #allocation0 [shape = 'u32[]', space=smem, size = 0x4, offset = 0x4, fixed_abs, tag = 'smem constant byte address 0x4 - core index']
  #allocation1 [shape = 'u32[144,128]{1,0:T(1,128)}', space=vmem, size = 0x12000, scoped, tag = 'internal scratch']
  %s0 = inlined_call_operand.vmem [shape: f32[2,16,32], index: 0, kind: input, shape index: {}]
  %s1 = inlined_call_operand.vmem [shape: f32[2,16,4], index: 1, kind: input, shape index: {}]
  %s2 = inlined_call_operand.vmem [shape: f32[2,1,4], index: 2, kind: input, shape index: {}]
  %s3 = inlined_call_operand.vmem [shape: f32[2,16,1], index: 3, kind: input, shape index: {}]
  %s4 = inlined_call_operand.hbm [shape: f32[1,2,32,32], index: 4, kind: output, shape index: {0}]
  %s5 = inlined_call_operand.hbm [shape: f32[1,2,4,4], index: 5, kind: output, shape index: {1}]
  %s6 = inlined_call_operand.vmem [shape: f32[1,2,32,4], index: 6, kind: output, shape index: {2}]
  %7 = xla_tuple %s4, %s5, %s6
  %s8 = sld [smem:[#allocation0]]
  $region69: #{tpu_custom_call.1} parent=0
    _
  %s10 = ssub.s32 1, %s8
  %s11 = scalar_select 0, %s10, %s8
  $region1: #{tpu_custom_call.1} parent=0
    #allocation2 [shape = 'u8[32768]{0}', space=vmem, size = 0x8000, scoped, tag = 'output window, operand 0']
    #allocation3 [shape = 's32[2]{0}', space=sflag, size = 0x8, scoped, tag = 'scoped memory for tpu_custom_call.1']
    #allocation4 [shape = 'u8[4096]{0}', space=vmem, size = 0x1000, scoped, tag = 'output window, operand 1']
    #allocation5 [shape = 's32[2]{0}', space=sflag, size = 0x8, scoped, tag = 'scoped memory for tpu_custom_call.1']
    %12 = vsyncpa [#allocation3], 0
    %s13 = scalar_lea.sflag [#allocation3], 1
    %14 = vsyncpa %s13, 0
    %15 = vsyncpa [#allocation5], 0
    %s16 = scalar_lea.sflag [#allocation5], 1
    %17 = vsyncpa %s16, 0
    loop: start=0, step=1, limit=4
    $region2: #{tpu_custom_call.1} parent=1 // loop_pre_header
      _
    $region3: #{tpu_custom_call.1} parent=1 // loop_header
      %s19 = sphi 0, %s23
      %p20 = scmp.ge.s32.totalorder %s19, 4
      %s26 = sphi 0, %s45
      %s27 = sphi 0, %s41
      %s28 = sphi 0, %s37
      %s29 = sphi 0, %s26
      %s30 = sphi 0, %s27
      %s31 = sphi 0, %s28
      %s32 = sphi 0, %s29
      %s33 = sphi 0, %s30
      %s34 = sphi 0, %s31
      %s56 = sphi 0, %s58
      %s59 = sphi 0, %s56
      %s60 = sphi 0, %s59
      %s76 = sphi 0, %s60
      %s90 = sphi 0, %s92
      %s93 = sphi 0, %s90
      %s94 = sphi 0, %s93
      %s110 = sphi 0, %s94
      %s116 = sphi 0, %s118
      %s119 = sphi 0, %s116
      %s120 = sphi 0, %s119
      %s136 = sphi 0, %s120
      %s150 = sphi 0, %s152
      %s153 = sphi 0, %s150
      %s154 = sphi 0, %s153
      %s170 = sphi 0, %s154
      %s178 = sphi 0, %s180
      %s181 = sphi 0, %s178
      %s182 = sphi 0, %s181
      %s198 = sphi 0, %s182
      %s206 = sphi 0, %s208
      %s209 = sphi 0, %s206
      %s210 = sphi 0, %s209
      %s226 = sphi 0, %s210
      %s234 = sphi 0, %s236
      %s237 = sphi 0, %s234
      %s238 = sphi 0, %s237
      %s254 = sphi 0, %s238
    $region4: #{tpu_custom_call.1} parent=1 // loop_header_branch
      %22 = sbr.rel (%p20) target = $region8
    $region5: #{tpu_custom_call.1} parent=1 // loop_body
      %s24 = ssub.s32 %s19, 1
      %s25 = ssub.s32 %s19, 2
      %s35 = sadd.s32 1, %s28
      %p36 = scmp.ge.s32.totalorder %s35, 1
      %s37 = scalar_select %p36, 0, %s35
      %s38 = sadd.s32 1, %s27
      %s39 = scalar_select %p36, %s38, %s27
      %p40 = scmp.ge.s32.totalorder %s39, 2
      %s41 = scalar_select %p40, 0, %s39
      %s42 = sadd.s32 1, %s26
      %s43 = scalar_select %p40, %s42, %s26
      %p44 = scmp.ge.s32.totalorder %s43, 1
      %s45 = scalar_select %p44, 0, %s43
      %s46 = sadd.s32 %s26, %s28
      %p47 = scmp.lt.s32.totalorder %s46, 0
      %s48 = scalar_select %p47, %s46, 0
      %s49 = sadd.s32 %s45, %s37
      %p50 = scmp.lt.s32.totalorder %s49, 0
      %s51 = scalar_select %p50, %s49, 0
      %s52 = ssub.s32 %s27, %s41
      %s53 = ssub.s32 %s48, %s51
      %s54 = sor.u32 %s52, %s53
      %p55 = scmp.eq.s32.totalorder %s54, 0
      %s57 = sadd.s32 %s56, 1
      %s58 = scalar_select %p55, %s56, %s57
      %p61 = pneg %p55
      %p62 = scmp.eq.s32.totalorder %s19, 1
      %p63 = por %p61, %p62
      %p64 = scmp.ne.s32.totalorder %s56, %s59
      %p65 = scmp.eq.s32.totalorder %s19, 0
      %p66 = por %p64, %p65
      %p67 = scmp.ne.s32.totalorder %s56, %s59
      %p68 = scmp.eq.s32.totalorder %s24, 1
      %p69 = por %p67, %p68
      %p70 = scmp.ne.s32.totalorder %s59, %s60
      %p71 = scmp.eq.s32.totalorder %s24, 0
      %p72 = por %p70, %p71
      %p73 = scmp.ne.s32.totalorder %s59, %s60
      %p74 = scmp.eq.s32.totalorder %s25, 1
      %p75 = por %p73, %p74
      %p77 = scmp.ne.s32.totalorder %s60, %s76
      %p78 = scmp.eq.s32.totalorder %s25, 0
      %p79 = por %p77, %p78
      %s80 = sadd.s32 %s26, %s28
      %p81 = scmp.lt.s32.totalorder %s80, 0
      %s82 = scalar_select %p81, %s80, 0
      %s83 = sadd.s32 %s45, %s37
      %p84 = scmp.lt.s32.totalorder %s83, 0
      %s85 = scalar_select %p84, %s83, 0
      %s86 = ssub.s32 %s27, %s41
      %s87 = ssub.s32 %s82, %s85
      %s88 = sor.u32 %s86, %s87
      %p89 = scmp.eq.s32.totalorder %s88, 0
      %s91 = sadd.s32 %s90, 1
      %s92 = scalar_select %p89, %s90, %s91
      %p95 = pneg %p89
      %p96 = scmp.eq.s32.totalorder %s19, 1
      %p97 = por %p95, %p96
      %p98 = scmp.ne.s32.totalorder %s90, %s93
      %p99 = scmp.eq.s32.totalorder %s19, 0
      %p100 = por %p98, %p99
      %p101 = scmp.ne.s32.totalorder %s90, %s93
      %p102 = scmp.eq.s32.totalorder %s24, 1
      %p103 = por %p101, %p102
      %p104 = scmp.ne.s32.totalorder %s93, %s94
      %p105 = scmp.eq.s32.totalorder %s24, 0
      %p106 = por %p104, %p105
      %p107 = scmp.ne.s32.totalorder %s93, %s94
      %p108 = scmp.eq.s32.totalorder %s25, 1
      %p109 = por %p107, %p108
      %p111 = scmp.ne.s32.totalorder %s94, %s110
      %p112 = scmp.eq.s32.totalorder %s25, 0
      %p113 = por %p111, %p112
      %s114 = ssub.s32 %s27, %s41
      %p115 = scmp.eq.s32.totalorder %s114, 0
      %s117 = sadd.s32 %s116, 1
      %s118 = scalar_select %p115, %s116, %s117
      %p121 = pneg %p115
      %p122 = scmp.eq.s32.totalorder %s19, 1
      %p123 = por %p121, %p122
      %p124 = scmp.ne.s32.totalorder %s116, %s119
      %p125 = scmp.eq.s32.totalorder %s19, 0
      %p126 = por %p124, %p125
      %p127 = scmp.ne.s32.totalorder %s116, %s119
      %p128 = scmp.eq.s32.totalorder %s24, 1
      %p129 = por %p127, %p128
      %p130 = scmp.ne.s32.totalorder %s119, %s120
      %p131 = scmp.eq.s32.totalorder %s24, 0
      %p132 = por %p130, %p131
      %p133 = scmp.ne.s32.totalorder %s119, %s120
      %p134 = scmp.eq.s32.totalorder %s25, 1
      %p135 = por %p133, %p134
      %p137 = scmp.ne.s32.totalorder %s120, %s136
      %p138 = scmp.eq.s32.totalorder %s25, 0
      %p139 = por %p137, %p138
      %s140 = sadd.s32 %s26, %s28
      %p141 = scmp.lt.s32.totalorder %s140, 0
      %s142 = scalar_select %p141, %s140, 0
      %s143 = sadd.s32 %s45, %s37
      %p144 = scmp.lt.s32.totalorder %s143, 0
      %s145 = scalar_select %p144, %s143, 0
      %s146 = ssub.s32 %s27, %s41
      %s147 = ssub.s32 %s142, %s145
      %s148 = sor.u32 %s146, %s147
      %p149 = scmp.eq.s32.totalorder %s148, 0
      %s151 = sadd.s32 %s150, 1
      %s152 = scalar_select %p149, %s150, %s151
      %p155 = pneg %p149
      %p156 = scmp.eq.s32.totalorder %s19, 1
      %p157 = por %p155, %p156
      %p158 = scmp.ne.s32.totalorder %s150, %s153
      %p159 = scmp.eq.s32.totalorder %s19, 0
      %p160 = por %p158, %p159
      %p161 = scmp.ne.s32.totalorder %s150, %s153
      %p162 = scmp.eq.s32.totalorder %s24, 1
      %p163 = por %p161, %p162
      %p164 = scmp.ne.s32.totalorder %s153, %s154
      %p165 = scmp.eq.s32.totalorder %s24, 0
      %p166 = por %p164, %p165
      %p167 = scmp.ne.s32.totalorder %s153, %s154
      %p168 = scmp.eq.s32.totalorder %s25, 1
      %p169 = por %p167, %p168
      %p171 = scmp.ne.s32.totalorder %s154, %s170
      %p172 = scmp.eq.s32.totalorder %s25, 0
      %p173 = por %p171, %p172
      %s174 = ssub.s32 %s26, %s45
      %s175 = ssub.s32 %s27, %s41
      %s176 = sor.u32 %s174, %s175
      %p177 = scmp.eq.s32.totalorder %s176, 0
      %s179 = sadd.s32 %s178, 1
      %s180 = scalar_select %p177, %s178, %s179
      %p183 = pneg %p177
      %p184 = scmp.eq.s32.totalorder %s19, 1
      %p185 = por %p183, %p184
      %p186 = scmp.ne.s32.totalorder %s178, %s181
      %p187 = scmp.eq.s32.totalorder %s19, 0
      %p188 = por %p186, %p187
      %p189 = scmp.ne.s32.totalorder %s178, %s181
      %p190 = scmp.eq.s32.totalorder %s24, 1
      %p191 = por %p189, %p190
      %p192 = scmp.ne.s32.totalorder %s181, %s182
      %p193 = scmp.eq.s32.totalorder %s24, 0
      %p194 = por %p192, %p193
      %p195 = scmp.ne.s32.totalorder %s181, %s182
      %p196 = scmp.eq.s32.totalorder %s25, 1
      %p197 = por %p195, %p196
      %p199 = scmp.ne.s32.totalorder %s182, %s198
      %p200 = scmp.eq.s32.totalorder %s25, 0
      %p201 = por %p199, %p200
      %s202 = ssub.s32 %s26, %s45
      %s203 = ssub.s32 %s27, %s41
      %s204 = sor.u32 %s202, %s203
      %p205 = scmp.eq.s32.totalorder %s204, 0
      %s207 = sadd.s32 %s206, 1
      %s208 = scalar_select %p205, %s206, %s207
      %p211 = pneg %p205
      %p212 = scmp.eq.s32.totalorder %s19, 1
      %p213 = por %p211, %p212
      %p214 = scmp.ne.s32.totalorder %s206, %s209
      %p215 = scmp.eq.s32.totalorder %s19, 0
      %p216 = por %p214, %p215
      %p217 = scmp.ne.s32.totalorder %s206, %s209
      %p218 = scmp.eq.s32.totalorder %s24, 1
      %p219 = por %p217, %p218
      %p220 = scmp.ne.s32.totalorder %s209, %s210
      %p221 = scmp.eq.s32.totalorder %s24, 0
      %p222 = por %p220, %p221
      %p223 = scmp.ne.s32.totalorder %s209, %s210
      %p224 = scmp.eq.s32.totalorder %s25, 1
      %p225 = por %p223, %p224
      %p227 = scmp.ne.s32.totalorder %s210, %s226
      %p228 = scmp.eq.s32.totalorder %s25, 0
      %p229 = por %p227, %p228
      %s230 = ssub.s32 %s26, %s45
      %s231 = ssub.s32 %s27, %s41
      %s232 = sor.u32 %s230, %s231
      %p233 = scmp.eq.s32.totalorder %s232, 0
      %s235 = sadd.s32 %s234, 1
      %s236 = scalar_select %p233, %s234, %s235
      %p239 = pneg %p233
      %p240 = scmp.eq.s32.totalorder %s19, 1
      %p241 = por %p239, %p240
      %p242 = scmp.ne.s32.totalorder %s234, %s237
      %p243 = scmp.eq.s32.totalorder %s19, 0
      %p244 = por %p242, %p243
      %p245 = scmp.ne.s32.totalorder %s234, %s237
      %p246 = scmp.eq.s32.totalorder %s24, 1
      %p247 = por %p245, %p246
      %p248 = scmp.ne.s32.totalorder %s237, %s238
      %p249 = scmp.eq.s32.totalorder %s24, 0
      %p250 = por %p248, %p249
      %p251 = scmp.ne.s32.totalorder %s237, %s238
      %p252 = scmp.eq.s32.totalorder %s25, 1
      %p253 = por %p251, %p252
      %p255 = scmp.ne.s32.totalorder %s238, %s254
      %p256 = scmp.eq.s32.totalorder %s25, 0
      %p257 = por %p255, %p256
      %p258 = scmp.le.s32.totalorder 1, %s19
      %p259 = scmp.lt.s32.totalorder %s19, 3
      %p260 = pnand %p258, %p259
      %p261 = pneg %p260
      // Predicated region
      $region9: #{tpu_custom_call.1} parent=5 // pred_check
        _
      $region10: #{tpu_custom_call.1} parent=5 // pred_check_branch
        %263 = sbr.rel (%p260) target = $region12
      $region11: #{tpu_custom_call.1} parent=5 // pred_region
        %s264 = ssub.s32 %s19, 1
      $region12: #{tpu_custom_call.1} parent=5 // pred_fallthru
        _
      %p265 = scmp.lt.s32.totalorder %s19, 2
      // Predicated region
      $region13: #{tpu_custom_call.1} parent=5 // pred_check
        %p266 = pneg %p265
      $region14: #{tpu_custom_call.1} parent=5 // pred_check_branch
        %268 = sbr.rel (%p266) target = $region16
      $region15: #{tpu_custom_call.1} parent=5 // pred_region
        // Predicated region
        $region17: #{tpu_custom_call.1} parent=15 // pred_check
          %p269 = pneg %p66
        $region18: #{tpu_custom_call.1} parent=15 // pred_check_branch
          %271 = sbr.rel (%p269) target = $region20
        $region19: #{tpu_custom_call.1} parent=15 // pred_region
          %s272 = sadd.s32 %s26, %s28
          %p273 = scmp.lt.s32.totalorder %s272, 0
          %s274 = scalar_select %p273, %s272, 0
          %s275 = smul.u32 2, %s274
          %p276 = scmp.lt.s32.totalorder %s27, 1
          %s277 = scalar_select %p276, %s27, 1
          %p278 = scmp.lt.s32.totalorder %s275, 1
          %s279 = scalar_select %p278, %s275, 1
          %s280 = smul.addr %s277, 2
          %s281 = sadd.s32 %s279, %s280
          %s282 = smul.addr %s281, 8
          %s283 = scalar_lea.vmem %s0, %s282
          %s284 = sadd.s32 %s26, %s28
          %p285 = scmp.lt.s32.totalorder %s284, 0
          %s286 = scalar_select %p285, %s284, 0
          %s287 = smul.u32 2, %s286
        $region20: #{tpu_custom_call.1} parent=15 // pred_fallthru
          _
        // Predicated region
        $region21: #{tpu_custom_call.1} parent=15 // pred_check
          %p288 = pneg %p100
        $region22: #{tpu_custom_call.1} parent=15 // pred_check_branch
          %290 = sbr.rel (%p288) target = $region24
        $region23: #{tpu_custom_call.1} parent=15 // pred_region
          %s291 = sadd.s32 %s26, %s28
          %p292 = scmp.lt.s32.totalorder %s291, 0
          %s293 = scalar_select %p292, %s291, 0
          %s294 = smul.u32 2, %s293
          %p295 = scmp.lt.s32.totalorder %s27, 1
          %s296 = scalar_select %p295, %s27, 1
          %p297 = scmp.lt.s32.totalorder %s294, 1
          %s298 = scalar_select %p297, %s294, 1
          %s299 = smul.addr %s296, 2
          %s300 = sadd.s32 %s298, %s299
          %s301 = smul.addr %s300, 8
          %s302 = scalar_lea.vmem %s1, %s301
          %s303 = sadd.s32 %s26, %s28
          %p304 = scmp.lt.s32.totalorder %s303, 0
          %s305 = scalar_select %p304, %s303, 0
          %s306 = smul.u32 2, %s305
        $region24: #{tpu_custom_call.1} parent=15 // pred_fallthru
          _
        // Predicated region
        $region25: #{tpu_custom_call.1} parent=15 // pred_check
          %p307 = pneg %p126
        $region26: #{tpu_custom_call.1} parent=15 // pred_check_branch
          %309 = sbr.rel (%p307) target = $region28
        $region27: #{tpu_custom_call.1} parent=15 // pred_region
          %p310 = scmp.lt.s32.totalorder %s27, 1
          %s311 = scalar_select %p310, %s27, 1
          %s312 = scalar_lea.vmem %s2, %s311
        $region28: #{tpu_custom_call.1} parent=15 // pred_fallthru
          _
        // Predicated region
        $region29: #{tpu_custom_call.1} parent=15 // pred_check
          %p313 = pneg %p160
        $region30: #{tpu_custom_call.1} parent=15 // pred_check_branch
          %315 = sbr.rel (%p313) target = $region32
        $region31: #{tpu_custom_call.1} parent=15 // pred_region
          %s316 = sadd.s32 %s26, %s28
          %p317 = scmp.lt.s32.totalorder %s316, 0
          %s318 = scalar_select %p317, %s316, 0
          %s319 = smul.u32 2, %s318
          %p320 = scmp.lt.s32.totalorder %s27, 1
          %s321 = scalar_select %p320, %s27, 1
          %p322 = scmp.lt.s32.totalorder %s319, 1
          %s323 = scalar_select %p322, %s319, 1
          %s324 = smul.addr %s321, 2
          %s325 = sadd.s32 %s323, %s324
          %s326 = smul.addr %s325, 8
          %s327 = scalar_lea.vmem %s3, %s326
          %s328 = sadd.s32 %s26, %s28
          %p329 = scmp.lt.s32.totalorder %s328, 0
          %s330 = scalar_select %p329, %s328, 0
          %s331 = smul.u32 2, %s330
        $region32: #{tpu_custom_call.1} parent=15 // pred_fallthru
          _
      $region16: #{tpu_custom_call.1} parent=5 // pred_fallthru
        _
      %p332 = scmp.le.s32.totalorder 1, %s19
      %p333 = scmp.lt.s32.totalorder %s19, 3
      %p334 = pnand %p332, %p333
      %p335 = pneg %p334
      // Predicated region
      $region33: #{tpu_custom_call.1} parent=5 // pred_check
        _
      $region34: #{tpu_custom_call.1} parent=5 // pred_check_branch
        %337 = sbr.rel (%p334) target = $region36
      $region35: #{tpu_custom_call.1} parent=5 // pred_region
        %s338 = ssub.s32 %s19, 1
        %s339 = sadd.s32 %s29, %s31
        %p340 = scmp.lt.s32.totalorder %s339, 0
        %s341 = scalar_select %p340, %s339, 0
        %s342 = smul.u32 2, %s341
        %p343 = scmp.lt.s32.totalorder %s30, 1
        %s344 = scalar_select %p343, %s30, 1
        %p345 = scmp.lt.s32.totalorder %s342, 1
        %s346 = scalar_select %p345, %s342, 1
        %s347 = smul.addr %s344, 2
        %s348 = sadd.s32 %s346, %s347
        %s349 = smul.addr %s348, 8
        %s350 = scalar_lea.vmem %s0, %s349
        %p351 = pneg %p72
        %p352 = pneg %p69
        %s353 = sadd.s32 %s29, %s31
        %p354 = scmp.lt.s32.totalorder %s353, 0
        %s355 = scalar_select %p354, %s353, 0
        %s356 = smul.u32 2, %s355
        %p357 = scmp.lt.s32.totalorder %s30, 1
        %s358 = scalar_select %p357, %s30, 1
        %p359 = scmp.lt.s32.totalorder %s356, 1
        %s360 = scalar_select %p359, %s356, 1
        %s361 = smul.addr %s358, 2
        %s362 = sadd.s32 %s360, %s361
        %s363 = smul.addr %s362, 8
        %s364 = scalar_lea.vmem %s1, %s363
        %p365 = pneg %p106
        %p366 = pneg %p103
        %p367 = scmp.lt.s32.totalorder %s30, 1
        %s368 = scalar_select %p367, %s30, 1
        %s369 = scalar_lea.vmem %s2, %s368
        %p370 = pneg %p132
        %p371 = pneg %p129
        %s372 = sadd.s32 %s29, %s31
        %p373 = scmp.lt.s32.totalorder %s372, 0
        %s374 = scalar_select %p373, %s372, 0
        %s375 = smul.u32 2, %s374
        %p376 = scmp.lt.s32.totalorder %s30, 1
        %s377 = scalar_select %p376, %s30, 1
        %p378 = scmp.lt.s32.totalorder %s375, 1
        %s379 = scalar_select %p378, %s375, 1
        %s380 = smul.addr %s377, 2
        %s381 = sadd.s32 %s379, %s380
        %s382 = smul.addr %s381, 8
        %s383 = scalar_lea.vmem %s3, %s382
        %p384 = pneg %p166
        %p385 = pneg %p163
        %p386 = pneg %p194
        %p387 = pneg %p191
        %s388 = sand.u32 %s181, 1
        %s389 = scalar_lea.sflag [#allocation3], %s388
        %s390 = sand.u32 %s181, 1
        %s391 = smul.addr %s390, 32
        %s392 = scalar_lea.vmem [#allocation2], %s391
        %p393 = pneg %p222
        %p394 = pneg %p219
        %s395 = sand.u32 %s209, 1
        %s396 = scalar_lea.sflag [#allocation5], %s395
        %s397 = sand.u32 %s209, 1
        %s398 = smul.addr %s397, 4
        %s399 = scalar_lea.vmem [#allocation4], %s398
        %p400 = pneg %p250
        %p401 = pneg %p247
        %p402 = scmp.lt.s32.totalorder %s29, 0
        %s403 = scalar_select %p402, %s29, 0
        %p404 = scmp.lt.s32.totalorder %s30, 1
        %s405 = scalar_select %p404, %s30, 1
        %s406 = smul.addr %s405, 4
        %s407 = smul.addr %s403, 8
        %s408 = sadd.s32 %s406, %s407
        %s409 = smul.addr %s408, 8
        %s410 = scalar_lea.vmem %s6, %s409
        %s411 = sadd.s32 %s29, %s31
        %p412 = scmp.lt.s32.totalorder %s411, 0
        %s413 = scalar_select %p412, %s411, 0
        %s414 = smul.u32 2, %s413
        %p415 = scmp.lt.s32.totalorder %s30, 1
        %s416 = scalar_select %p415, %s30, 1
        %p417 = scmp.lt.s32.totalorder %s414, 1
        %s418 = scalar_select %p417, %s414, 1
        %s419 = smul.addr %s416, 2
        %s420 = sadd.s32 %s418, %s419
        %s421 = smul.addr %s420, 8
        %s422 = scalar_lea.vmem %s0, %s421
        %s423 = sadd.s32 %s29, %s31
        %p424 = scmp.lt.s32.totalorder %s423, 0
        %s425 = scalar_select %p424, %s423, 0
        %s426 = smul.u32 2, %s425
        %s427 = sadd.s32 %s29, %s31
        %p428 = scmp.lt.s32.totalorder %s427, 0
        %s429 = scalar_select %p428, %s427, 0
        %s430 = smul.u32 2, %s429
        %p431 = scmp.lt.s32.totalorder %s30, 1
        %s432 = scalar_select %p431, %s30, 1
        %p433 = scmp.lt.s32.totalorder %s430, 1
        %s434 = scalar_select %p433, %s430, 1
        %s435 = smul.addr %s432, 2
        %s436 = sadd.s32 %s434, %s435
        %s437 = smul.addr %s436, 8
        %s438 = scalar_lea.vmem %s1, %s437
        %s439 = sadd.s32 %s29, %s31
        %p440 = scmp.lt.s32.totalorder %s439, 0
        %s441 = scalar_select %p440, %s439, 0
        %s442 = smul.u32 2, %s441
        %p443 = scmp.lt.s32.totalorder %s30, 1
        %s444 = scalar_select %p443, %s30, 1
        %s445 = scalar_lea.vmem %s2, %s444
        %s446 = sadd.s32 %s29, %s31
        %p447 = scmp.lt.s32.totalorder %s446, 0
        %s448 = scalar_select %p447, %s446, 0
        %s449 = smul.u32 2, %s448
        %p450 = scmp.lt.s32.totalorder %s30, 1
        %s451 = scalar_select %p450, %s30, 1
        %p452 = scmp.lt.s32.totalorder %s449, 1
        %s453 = scalar_select %p452, %s449, 1
        %s454 = smul.addr %s451, 2
        %s455 = sadd.s32 %s453, %s454
        %s456 = smul.addr %s455, 8
        %s457 = scalar_lea.vmem %s3, %s456
        %s458 = sadd.s32 %s29, %s31
        %p459 = scmp.lt.s32.totalorder %s458, 0
        %s460 = scalar_select %p459, %s458, 0
        %s461 = smul.u32 2, %s460
        %p462 = scmp.lt.s32.totalorder %s29, 0
        %s463 = scalar_select %p462, %s29, 0
        %p464 = scmp.lt.s32.totalorder %s30, 1
        %s465 = scalar_select %p464, %s30, 1
        %s466 = smul.addr %s465, 4
        %s467 = smul.addr %s463, 8
        %s468 = sadd.s32 %s466, %s467
        %s469 = smul.addr %s468, 8
        %s470 = scalar_lea.vmem %s6, %s469
        %p471 = scmp.eq.s32.totalorder %s31, 0
        // Predicated region
        $region37: #{tpu_custom_call.1} parent=35 // pred_check
          %p472 = pneg %p471
        $region38: #{tpu_custom_call.1} parent=35 // pred_check_branch
          %474 = sbr.rel (%p472) target = $region40
        $region39: #{tpu_custom_call.1} parent=35 // pred_region
          %vm475 = vcmask 261120
          %476 = vst.msk [vmem:[%s392] sm:$0xff] %vm475, 0.0
          %477 = vst.msk [vmem:[%s392 + $0x8] sm:$0xff] %vm475, 0.0
          %478 = vst.msk [vmem:[%s392 + $0x10] sm:$0xff] %vm475, 0.0
          %479 = vst.msk [vmem:[%s392 + $0x18] sm:$0xff] %vm475, 0.0
          %vm480 = vcmask 27648
          %481 = vst.msk [vmem:[%s399] sm:$0xf] %vm480, 0.0
          %vm482 = vcmask 31744
          %483 = vst.msk [vmem:[%s470] sm:$0xff] %vm482, 0.0
          %484 = vst.msk [vmem:[%s470 + $0x8] sm:$0xff] %vm482, 0.0
          %485 = vst.msk [vmem:[%s470 + $0x10] sm:$0xff] %vm482, 0.0
          %486 = vst.msk [vmem:[%s470 + $0x18] sm:$0xff] %vm482, 0.0
        $region40: #{tpu_custom_call.1} parent=35 // pred_fallthru
          _
        %s487 = sadd.s32 %s29, %s31
        %s488 = smul.u32 %s487, 16
        %s489 = ssub.s32 16, %s488
        %v490 = vlaneseq
        %v491 = vshrl.u32 %v490, 7
        %v492 = vadd.s32 %v491, 8
        %v493 = vstv %s489
        %vm494 = vcmp.lt.s32.totalorder %v491, %v493
        %vm495 = vcmp.lt.s32.totalorder %v492, %v493
        %v496 = vld [vmem:[%s422] sm:$0xff]
        %v497 = vld [vmem:[%s422 + $0x8] sm:$0xff]
        %v498 = vsel %vm494, 1, 0
        %v499 = vsel %vm495, 1, 0
        %vm500 = vcmp.eq.s32.totalorder %v498, 1
        %vm501 = vcmp.eq.s32.totalorder %v499, 1
        %v502 = vsel %vm500, %v496, 0.0
        %v503 = vsel %vm501, %v497, 0.0
        %v504 = vld [vmem:[%s438] sm:$0xff]
        %v505 = vld [vmem:[%s438 + $0x8] sm:$0xff]
        %v506 = vsel %vm500, %v504, 0.0
        %v507 = vsel %vm501, %v505, 0.0
        %v508 = vld [vmem:[%s445] sm:$0x1]
        %v510 = vlaneseq
        %v511 = vshrl.u32 %v510, 7
        %v512 = vsub.s32 0, %v511
        %v513 = vrot.slane %v508, %v512
        %v515 = vmul.f32 %v506, %v513
        %v516 = vmul.f32 %v507, %v513
        %vm517 = vcmask 31744
        %v518 = vsel %vm517, %v515, 0.0
        %519 = vadd.xlane.f32.xlu0 %v518
        %v520 = vpop.xlane.xlu0 %519
        %v521 = vsel %vm517, %v516, 0.0
        %522 = vadd.xlane.f32.xlu0 %v521
        %v523 = vpop.xlane.xlu0 %522
        %v524 = vld [vmem:[%s457] sm:$0xff]
        %v525 = vld [vmem:[%s457 + $0x8] sm:$0xff]
        %v526 = vsel %vm494, %v524, 0.0
        %v527 = vsel %vm495, %v525, 0.0
        %v528 = vmul.f32 %v526, %v526
        %v529 = vmul.f32 %v527, %v527
        %v530 = vmul.f32 %v526, %v520
        %v531 = vmul.f32 %v527, %v523
        %v532 = vadd.f32 %v530, 1e-12
        %v533 = vadd.f32 %v531, 1e-12
        %v534 = vrsqrt.pop %v532
        %v535 = vrsqrt.pop %v533
        %v536 = vmul.f32 %v528, %v534
        %v537 = vmul.f32 %v529, %v535
        %539 = vset.pattern.permute.xlu0 0
        %540 = vperm.xlu0 %539, %v536
        %v541 = vpop.permute.xlu0 %540
        %544 = vset.pattern.permute.xlu0 0
        %545 = vperm.xlu0 %544, %v537
        %v546 = vpop.permute.xlu0 %545
        %v548 = vmul.f32 %v541, %v502
        %v549 = vmul.f32 %v546, %v503
        %v550 = vmul.f32 %v541, %v506
        %v551 = vmul.f32 %v546, %v507
        %v552 = vld [vmem:[%s392] sm:$0xff]
        %v553 = vld [vmem:[%s392 + $0x8] sm:$0xff]
        %v554 = vld [vmem:[%s392 + $0x10] sm:$0xff]
        %v555 = vld [vmem:[%s392 + $0x18] sm:$0xff]
        %556 = vxpose.xlu0.b32.start [1/16] %v548, 128
        %557 = vxpose.xlu0.b32.cont [2/16] %v549, 128
        %558 = vxpose.xlu0.b32.cont [3/16] 0.0, 128
        %559 = vxpose.xlu0.b32.cont [4/16] 0.0, 128
        %560 = vxpose.xlu0.b32.cont [5/16] 0.0, 128
        %561 = vxpose.xlu0.b32.cont [6/16] 0.0, 128
        %562 = vxpose.xlu0.b32.cont [7/16] 0.0, 128
        %563 = vxpose.xlu0.b32.cont [8/16] 0.0, 128
        %564 = vxpose.xlu0.b32.cont [9/16] 0.0, 128
        %565 = vxpose.xlu0.b32.cont [10/16] 0.0, 128
        %566 = vxpose.xlu0.b32.cont [11/16] 0.0, 128
        %567 = vxpose.xlu0.b32.cont [12/16] 0.0, 128
        %568 = vxpose.xlu0.b32.cont [13/16] 0.0, 128
        %569 = vxpose.xlu0.b32.cont [14/16] 0.0, 128
        %570 = vxpose.xlu0.b32.cont [15/16] 0.0, 128
        %571 = vxpose.xlu0.b32.end [16/16] 0.0, 128
        %v572 = vpop.trf.xlu0
        %v573 = vpop.trf.xlu0
        %v574 = vpop.trf.xlu0
        %v575 = vpop.trf.xlu0
        %v576 = vpop.trf.xlu0
        %v577 = vpop.trf.xlu0
        %v578 = vpop.trf.xlu0
        %v579 = vpop.trf.xlu0
        %v580 = vpop.trf.xlu0
        %v581 = vpop.trf.xlu0
        %v582 = vpop.trf.xlu0
        %v583 = vpop.trf.xlu0
        %v584 = vpop.trf.xlu0
        %v585 = vpop.trf.xlu0
        %v586 = vpop.trf.xlu0
        %v587 = vpop.trf.xlu0
        %vm588 = vcmask 130048
        %v590 = vsel %vm588, %v572, 0
        %v593 = vsel %vm588, %v573, 0
        %v596 = vsel %vm588, %v574, 0
        %v599 = vsel %vm588, %v575, 0
        %601 = vmatprep.subr.mxu0 0.0
        %602 = vmatpush1.msra.mxu0 %v502
        %603 = vmatprep.subr.mxu0 0.0
        %604 = vmatpush1.msra.mxu0 %v503
        %605 = vmatprep.subr.mxu0 0.0
        %606 = vmatpush1.msra.mxu0 0.0
        %607 = vmatprep.subr.mxu0 0.0
        %608 = vmatpush1.msra.mxu0 0.0
        %609 = vmatprep.subr.mxu0 0.0
        %610 = vmatpush1.msra.mxu0 0.0
        %611 = vmatprep.subr.mxu0 0.0
        %612 = vmatpush1.msra.mxu0 0.0
        %613 = vmatprep.subr.mxu0 0.0
        %614 = vmatpush1.msra.mxu0 0.0
        %615 = vmatprep.subr.mxu0 0.0
        %616 = vmatpush1.msra.mxu0 0.0
        %617 = vmatprep.subr.mxu0 0.0
        %618 = vmatpush1.msra.mxu0 0.0
        %619 = vmatprep.subr.mxu0 0.0
        %620 = vmatpush1.msra.mxu0 0.0
        %621 = vmatprep.subr.mxu0 0.0
        %622 = vmatpush1.msra.mxu0 0.0
        %623 = vmatprep.subr.mxu0 0.0
        %624 = vmatpush1.msra.mxu0 0.0
        %625 = vmatprep.subr.mxu0 0.0
        %626 = vmatpush1.msra.mxu0 0.0
        %627 = vmatprep.subr.mxu0 0.0
        %628 = vmatpush1.msra.mxu0 0.0
        %629 = vmatprep.subr.mxu0 0.0
        %630 = vmatpush1.msra.mxu0 0.0
        %631 = vmatprep.subr.mxu0 0.0
        %632 = vmatpush1.msra.mxu0 0.0
        %633 = vmatprep.subr.mxu0 0.0
        %634 = vmatpush1.msra.mxu0 0.0
        %635 = vmatprep.subr.mxu0 0.0
        %636 = vmatpush1.msra.mxu0 0.0
        %637 = vmatprep.subr.mxu0 0.0
        %638 = vmatpush1.msra.mxu0 0.0
        %639 = vmatprep.subr.mxu0 0.0
        %640 = vmatpush1.msra.mxu0 0.0
        %641 = vmatprep.subr.mxu0 0.0
        %642 = vmatpush1.msra.mxu0 0.0
        %643 = vmatprep.subr.mxu0 0.0
        %644 = vmatpush1.msra.mxu0 0.0
        %645 = vmatprep.subr.mxu0 0.0
        %646 = vmatpush1.msra.mxu0 0.0
        %647 = vmatprep.subr.mxu0 0.0
        %648 = vmatpush1.msra.mxu0 0.0
        %649 = vmatprep.subr.mxu0 0.0
        %650 = vmatpush1.msra.mxu0 0.0
        %651 = vmatprep.subr.mxu0 0.0
        %652 = vmatpush1.msra.mxu0 0.0
        %653 = vmatprep.subr.mxu0 0.0
        %654 = vmatpush1.msra.mxu0 0.0
        %655 = vmatprep.subr.mxu0 0.0
        %656 = vmatpush1.msra.mxu0 0.0
        %657 = vmatprep.subr.mxu0 0.0
        %658 = vmatpush1.msra.mxu0 0.0
        %659 = vmatprep.subr.mxu0 0.0
        %660 = vmatpush1.msra.mxu0 0.0
        %661 = vmatprep.subr.mxu0 0.0
        %662 = vmatpush1.msra.mxu0 0.0
        %663 = vmatprep.subr.mxu0 0.0
        %664 = vmatpush1.msra.mxu0 0.0
        %665 = vmatprep.mubr.f32.mxu0 0.0
        %666 = vmatmul.mubr.f32.gmra.mrb[0].mxu0 %v590
        %v667 = vpop.f32.mrb[0].mxu0
        %v668 = vadd.f32 0.0, %v667
        %v669 = vpop.f32.mrb[0].mxu0
        %670 = vmatprep.mubr.f32.mxu0 0.0
        %671 = vmatmul.mubr.f32.gmra.mrb[0].mxu0 %v593
        %v672 = vpop.f32.mrb[0].mxu0
        %v673 = vadd.f32 0.0, %v672
        %v674 = vpop.f32.mrb[0].mxu0
        %675 = vmatprep.mubr.f32.mxu0 0.0
        %676 = vmatmul.mubr.f32.gmra.mrb[0].mxu0 %v596
        %v677 = vpop.f32.mrb[0].mxu0
        %v678 = vadd.f32 0.0, %v677
        %v679 = vpop.f32.mrb[0].mxu0
        %680 = vmatprep.mubr.f32.mxu0 0.0
        %681 = vmatmul.mubr.f32.gmra.mrb[0].mxu0 %v599
        %v682 = vpop.f32.mrb[0].mxu0
        %v683 = vadd.f32 0.0, %v682
        %v684 = vpop.f32.mrb[0].mxu0
        %685 = vdwg.mxu0
        %v686 = vadd.f32 %v552, %v668
        %v687 = vadd.f32 %v553, %v673
        %v688 = vadd.f32 %v554, %v678
        %v689 = vadd.f32 %v555, %v683
        %vm690 = vcmask 261120
        %691 = vst.msk [vmem:[%s392] sm:$0xff] %vm690, %v686
        %692 = vst.msk [vmem:[%s392 + $0x8] sm:$0xff] %vm690, %v687
        %693 = vst.msk [vmem:[%s392 + $0x10] sm:$0xff] %vm690, %v688
        %694 = vst.msk [vmem:[%s392 + $0x18] sm:$0xff] %vm690, %v689
        %v695 = vld [vmem:[%s399] sm:$0xf]
        %696 = vxpose.xlu0.b32.start [1/16] %v550, 128
        %697 = vxpose.xlu0.b32.cont [2/16] %v551, 128
        %698 = vxpose.xlu0.b32.cont [3/16] 0.0, 128
        %699 = vxpose.xlu0.b32.cont [4/16] 0.0, 128
        %700 = vxpose.xlu0.b32.cont [5/16] 0.0, 128
        %701 = vxpose.xlu0.b32.cont [6/16] 0.0, 128
        %702 = vxpose.xlu0.b32.cont [7/16] 0.0, 128
        %703 = vxpose.xlu0.b32.cont [8/16] 0.0, 128
        %704 = vxpose.xlu0.b32.cont [9/16] 0.0, 128
        %705 = vxpose.xlu0.b32.cont [10/16] 0.0, 128
        %706 = vxpose.xlu0.b32.cont [11/16] 0.0, 128
        %707 = vxpose.xlu0.b32.cont [12/16] 0.0, 128
        %708 = vxpose.xlu0.b32.cont [13/16] 0.0, 128
        %709 = vxpose.xlu0.b32.cont [14/16] 0.0, 128
        %710 = vxpose.xlu0.b32.cont [15/16] 0.0, 128
        %711 = vxpose.xlu0.b32.end [16/16] 0.0, 128
        %v712 = vpop.trf.xlu0
        %v713 = vpop.trf.xlu0
        %v714 = vpop.trf.xlu0
        %v715 = vpop.trf.xlu0
        %v716 = vpop.trf.xlu0
        %v717 = vpop.trf.xlu0
        %v718 = vpop.trf.xlu0
        %v719 = vpop.trf.xlu0
        %v720 = vpop.trf.xlu0
        %v721 = vpop.trf.xlu0
        %v722 = vpop.trf.xlu0
        %v723 = vpop.trf.xlu0
        %v724 = vpop.trf.xlu0
        %v725 = vpop.trf.xlu0
        %v726 = vpop.trf.xlu0
        %v727 = vpop.trf.xlu0
        %v729 = vsel %vm588, %v712, 0
        %731 = vmatprep.subr.mxu0 0.0
        %732 = vmatpush1.msra.mxu0 %v506
        %733 = vmatprep.subr.mxu0 0.0
        %734 = vmatpush1.msra.mxu0 %v507
        %735 = vmatprep.subr.mxu0 0.0
        %736 = vmatpush1.msra.mxu0 0.0
        %737 = vmatprep.subr.mxu0 0.0
        %738 = vmatpush1.msra.mxu0 0.0
        %739 = vmatprep.subr.mxu0 0.0
        %740 = vmatpush1.msra.mxu0 0.0
        %741 = vmatprep.subr.mxu0 0.0
        %742 = vmatpush1.msra.mxu0 0.0
        %743 = vmatprep.subr.mxu0 0.0
        %744 = vmatpush1.msra.mxu0 0.0
        %745 = vmatprep.subr.mxu0 0.0
        %746 = vmatpush1.msra.mxu0 0.0
        %747 = vmatprep.subr.mxu0 0.0
        %748 = vmatpush1.msra.mxu0 0.0
        %749 = vmatprep.subr.mxu0 0.0
        %750 = vmatpush1.msra.mxu0 0.0
        %751 = vmatprep.subr.mxu0 0.0
        %752 = vmatpush1.msra.mxu0 0.0
        %753 = vmatprep.subr.mxu0 0.0
        %754 = vmatpush1.msra.mxu0 0.0
        %755 = vmatprep.subr.mxu0 0.0
        %756 = vmatpush1.msra.mxu0 0.0
        %757 = vmatprep.subr.mxu0 0.0
        %758 = vmatpush1.msra.mxu0 0.0
        %759 = vmatprep.subr.mxu0 0.0
        %760 = vmatpush1.msra.mxu0 0.0
        %761 = vmatprep.subr.mxu0 0.0
        %762 = vmatpush1.msra.mxu0 0.0
        %763 = vmatprep.subr.mxu0 0.0
        %764 = vmatpush1.msra.mxu0 0.0
        %765 = vmatprep.subr.mxu0 0.0
        %766 = vmatpush1.msra.mxu0 0.0
        %767 = vmatprep.subr.mxu0 0.0
        %768 = vmatpush1.msra.mxu0 0.0
        %769 = vmatprep.subr.mxu0 0.0
        %770 = vmatpush1.msra.mxu0 0.0
        %771 = vmatprep.subr.mxu0 0.0
        %772 = vmatpush1.msra.mxu0 0.0
        %773 = vmatprep.subr.mxu0 0.0
        %774 = vmatpush1.msra.mxu0 0.0
        %775 = vmatprep.subr.mxu0 0.0
        %776 = vmatpush1.msra.mxu0 0.0
        %777 = vmatprep.subr.mxu0 0.0
        %778 = vmatpush1.msra.mxu0 0.0
        %779 = vmatprep.subr.mxu0 0.0
        %780 = vmatpush1.msra.mxu0 0.0
        %781 = vmatprep.subr.mxu0 0.0
        %782 = vmatpush1.msra.mxu0 0.0
        %783 = vmatprep.subr.mxu0 0.0
        %784 = vmatpush1.msra.mxu0 0.0
        %785 = vmatprep.subr.mxu0 0.0
        %786 = vmatpush1.msra.mxu0 0.0
        %787 = vmatprep.subr.mxu0 0.0
        %788 = vmatpush1.msra.mxu0 0.0
        %789 = vmatprep.subr.mxu0 0.0
        %790 = vmatpush1.msra.mxu0 0.0
        %791 = vmatprep.subr.mxu0 0.0
        %792 = vmatpush1.msra.mxu0 0.0
        %793 = vmatprep.subr.mxu0 0.0
        %794 = vmatpush1.msra.mxu0 0.0
        %795 = vmatprep.mubr.f32.mxu0 0.0
        %796 = vmatmul.mubr.f32.gmra.mrb[0].mxu0 %v729
        %v797 = vpop.f32.mrb[0].mxu0
        %v798 = vadd.f32 0.0, %v797
        %v799 = vpop.f32.mrb[0].mxu0
        %800 = vdwg.mxu0
        %v801 = vadd.f32 %v695, %v798
        %vm802 = vcmask 27648
        %803 = vst.msk [vmem:[%s399] sm:$0xf] %vm802, %v801
        %v804 = vld [vmem:[%s470] sm:$0xff]
        %v805 = vld [vmem:[%s470 + $0x8] sm:$0xff]
        %v806 = vld [vmem:[%s470 + $0x10] sm:$0xff]
        %v807 = vld [vmem:[%s470 + $0x18] sm:$0xff]
        %808 = vmatprep.subr.mxu0 0.0
        %809 = vmatpush1.msra.mxu0 %v506
        %810 = vmatprep.subr.mxu0 0.0
        %811 = vmatpush1.msra.mxu0 %v507
        %812 = vmatprep.subr.mxu0 0.0
        %813 = vmatpush1.msra.mxu0 0.0
        %814 = vmatprep.subr.mxu0 0.0
        %815 = vmatpush1.msra.mxu0 0.0
        %816 = vmatprep.subr.mxu0 0.0
        %817 = vmatpush1.msra.mxu0 0.0
        %818 = vmatprep.subr.mxu0 0.0
        %819 = vmatpush1.msra.mxu0 0.0
        %820 = vmatprep.subr.mxu0 0.0
        %821 = vmatpush1.msra.mxu0 0.0
        %822 = vmatprep.subr.mxu0 0.0
        %823 = vmatpush1.msra.mxu0 0.0
        %824 = vmatprep.subr.mxu0 0.0
        %825 = vmatpush1.msra.mxu0 0.0
        %826 = vmatprep.subr.mxu0 0.0
        %827 = vmatpush1.msra.mxu0 0.0
        %828 = vmatprep.subr.mxu0 0.0
        %829 = vmatpush1.msra.mxu0 0.0
        %830 = vmatprep.subr.mxu0 0.0
        %831 = vmatpush1.msra.mxu0 0.0
        %832 = vmatprep.subr.mxu0 0.0
        %833 = vmatpush1.msra.mxu0 0.0
        %834 = vmatprep.subr.mxu0 0.0
        %835 = vmatpush1.msra.mxu0 0.0
        %836 = vmatprep.subr.mxu0 0.0
        %837 = vmatpush1.msra.mxu0 0.0
        %838 = vmatprep.subr.mxu0 0.0
        %839 = vmatpush1.msra.mxu0 0.0
        %840 = vmatprep.subr.mxu0 0.0
        %841 = vmatpush1.msra.mxu0 0.0
        %842 = vmatprep.subr.mxu0 0.0
        %843 = vmatpush1.msra.mxu0 0.0
        %844 = vmatprep.subr.mxu0 0.0
        %845 = vmatpush1.msra.mxu0 0.0
        %846 = vmatprep.subr.mxu0 0.0
        %847 = vmatpush1.msra.mxu0 0.0
        %848 = vmatprep.subr.mxu0 0.0
        %849 = vmatpush1.msra.mxu0 0.0
        %850 = vmatprep.subr.mxu0 0.0
        %851 = vmatpush1.msra.mxu0 0.0
        %852 = vmatprep.subr.mxu0 0.0
        %853 = vmatpush1.msra.mxu0 0.0
        %854 = vmatprep.subr.mxu0 0.0
        %855 = vmatpush1.msra.mxu0 0.0
        %856 = vmatprep.subr.mxu0 0.0
        %857 = vmatpush1.msra.mxu0 0.0
        %858 = vmatprep.subr.mxu0 0.0
        %859 = vmatpush1.msra.mxu0 0.0
        %860 = vmatprep.subr.mxu0 0.0
        %861 = vmatpush1.msra.mxu0 0.0
        %862 = vmatprep.subr.mxu0 0.0
        %863 = vmatpush1.msra.mxu0 0.0
        %864 = vmatprep.subr.mxu0 0.0
        %865 = vmatpush1.msra.mxu0 0.0
        %866 = vmatprep.subr.mxu0 0.0
        %867 = vmatpush1.msra.mxu0 0.0
        %868 = vmatprep.subr.mxu0 0.0
        %869 = vmatpush1.msra.mxu0 0.0
        %870 = vmatprep.subr.mxu0 0.0
        %871 = vmatpush1.msra.mxu0 0.0
        %872 = vmatprep.mubr.f32.mxu0 0.0
        %873 = vmatmul.mubr.f32.gmra.mrb[0].mxu0 %v590
        %v874 = vpop.f32.mrb[0].mxu0
        %v875 = vadd.f32 0.0, %v874
        %v876 = vpop.f32.mrb[0].mxu0
        %877 = vmatprep.mubr.f32.mxu0 0.0
        %878 = vmatmul.mubr.f32.gmra.mrb[0].mxu0 %v593
        %v879 = vpop.f32.mrb[0].mxu0
        %v880 = vadd.f32 0.0, %v879
        %v881 = vpop.f32.mrb[0].mxu0
        %882 = vmatprep.mubr.f32.mxu0 0.0
        %883 = vmatmul.mubr.f32.gmra.mrb[0].mxu0 %v596
        %v884 = vpop.f32.mrb[0].mxu0
        %v885 = vadd.f32 0.0, %v884
        %v886 = vpop.f32.mrb[0].mxu0
        %887 = vmatprep.mubr.f32.mxu0 0.0
        %888 = vmatmul.mubr.f32.gmra.mrb[0].mxu0 %v599
        %v889 = vpop.f32.mrb[0].mxu0
        %v890 = vadd.f32 0.0, %v889
        %v891 = vpop.f32.mrb[0].mxu0
        %892 = vdwg.mxu0
        %v893 = vadd.f32 %v804, %v875
        %v894 = vadd.f32 %v805, %v880
        %v895 = vadd.f32 %v806, %v885
        %v896 = vadd.f32 %v807, %v890
        %897 = vst.msk [vmem:[%s470] sm:$0xff] %vm517, %v893
        %898 = vst.msk [vmem:[%s470 + $0x8] sm:$0xff] %vm517, %v894
        %899 = vst.msk [vmem:[%s470 + $0x10] sm:$0xff] %vm517, %v895
        %900 = vst.msk [vmem:[%s470 + $0x18] sm:$0xff] %vm517, %v896
        %s901 = sand.u32 %s181, 1
        %s902 = scalar_lea.sflag [#allocation3], %s901
        %s903 = sand.u32 %s181, 1
        %s904 = smul.addr %s903, 32
        %s905 = scalar_lea.vmem [#allocation2], %s904
        %s906 = sand.u32 %s209, 1
        %s907 = scalar_lea.sflag [#allocation5], %s906
        %s908 = sand.u32 %s209, 1
        %s909 = smul.addr %s908, 4
        %s910 = scalar_lea.vmem [#allocation4], %s909
        %p911 = scmp.lt.s32.totalorder %s29, 0
        %s912 = scalar_select %p911, %s29, 0
        %p913 = scmp.lt.s32.totalorder %s30, 1
        %s914 = scalar_select %p913, %s30, 1
        %s915 = smul.addr %s914, 4
        %s916 = smul.addr %s912, 8
        %s917 = sadd.s32 %s915, %s916
        %s918 = smul.addr %s917, 8
        %s919 = scalar_lea.vmem %s6, %s918
        // Predicated region
        $region41: #{tpu_custom_call.1} parent=35 // pred_check
          %p920 = pneg %p191
        $region42: #{tpu_custom_call.1} parent=35 // pred_check_branch
          %922 = sbr.rel (%p920) target = $region44
        $region43: #{tpu_custom_call.1} parent=35 // pred_region
          %s924 = ssub.s32 512, 512
          %925 = vsyncadd %s902, %s924
          %s926 = smul.addr %s30, 4
          %s927 = smul.addr %s29, 8
          %s928 = sadd.s32 %s926, %s927
          %s929 = smul.addr %s928, 128
          %s930 = scalar_lea.hbm %s4, %s929
          %s931 = sshll.u32 %s905, 4
          %s932 = int_to_ptr.vmem [resolvable:$true] %s931
          %937 = dma.vmem_to_hbm [thread:$0]  %s932, 512, %s930, %s902, 128, 128, 8
        $region44: #{tpu_custom_call.1} parent=35 // pred_fallthru
          _
        // Predicated region
        $region45: #{tpu_custom_call.1} parent=35 // pred_check
          %p938 = pneg %p219
        $region46: #{tpu_custom_call.1} parent=35 // pred_check_branch
          %940 = sbr.rel (%p938) target = $region48
        $region47: #{tpu_custom_call.1} parent=35 // pred_region
          %s942 = ssub.s32 64, 64
          %943 = vsyncadd %s907, %s942
          %s944 = smul.addr %s29, 2
          %s945 = sadd.s32 %s30, %s944
          %s946 = smul.addr %s945, 64
          %s947 = scalar_lea.hbm %s5, %s946
          %s949 = sshll.u32 %s910, 4
          %s950 = int_to_ptr.vmem [resolvable:$true] %s949
          %952 = dma.vmem_to_hbm [thread:$0]  %s950, 64, %s947, %s907
        $region48: #{tpu_custom_call.1} parent=35 // pred_fallthru
          _
        // Predicated region
        $region49: #{tpu_custom_call.1} parent=35 // pred_check
          %p953 = pneg %p247
        $region50: #{tpu_custom_call.1} parent=35 // pred_check_branch
          %955 = sbr.rel (%p953) target = $region52
        $region51: #{tpu_custom_call.1} parent=35 // pred_region
          _
        $region52: #{tpu_custom_call.1} parent=35 // pred_fallthru
          _
      $region36: #{tpu_custom_call.1} parent=5 // pred_fallthru
        _
      %p956 = scmp.le.s32.totalorder 2, %s19
      // Predicated region
      $region53: #{tpu_custom_call.1} parent=5 // pred_check
        %p957 = pneg %p956
      $region54: #{tpu_custom_call.1} parent=5 // pred_check_branch
        %959 = sbr.rel (%p957) target = $region56
      $region55: #{tpu_custom_call.1} parent=5 // pred_region
        %s960 = ssub.s32 %s19, 2
        // Predicated region
        $region57: #{tpu_custom_call.1} parent=55 // pred_check
          %p961 = pneg %p197
        $region58: #{tpu_custom_call.1} parent=55 // pred_check_branch
          %963 = sbr.rel (%p961) target = $region60
        $region59: #{tpu_custom_call.1} parent=55 // pred_region
          %s964 = sand.u32 %s182, 1
          %s965 = scalar_lea.sflag [#allocation3], %s964
          %s966 = sand.u32 %s182, 1
          %s967 = smul.addr %s966, 32
          %s968 = scalar_lea.vmem [#allocation2], %s967
          %969 = dma.done %s965, 512
        $region60: #{tpu_custom_call.1} parent=55 // pred_fallthru
          _
        // Predicated region
        $region61: #{tpu_custom_call.1} parent=55 // pred_check
          %p970 = pneg %p225
        $region62: #{tpu_custom_call.1} parent=55 // pred_check_branch
          %972 = sbr.rel (%p970) target = $region64
        $region63: #{tpu_custom_call.1} parent=55 // pred_region
          %s973 = sand.u32 %s210, 1
          %s974 = scalar_lea.sflag [#allocation5], %s973
          %s975 = sand.u32 %s210, 1
          %s976 = smul.addr %s975, 4
          %s977 = scalar_lea.vmem [#allocation4], %s976
          %978 = dma.done %s974, 64
        $region64: #{tpu_custom_call.1} parent=55 // pred_fallthru
          _
        // Predicated region
        $region65: #{tpu_custom_call.1} parent=55 // pred_check
          %p979 = pneg %p253
        $region66: #{tpu_custom_call.1} parent=55 // pred_check_branch
          %981 = sbr.rel (%p979) target = $region68
        $region67: #{tpu_custom_call.1} parent=55 // pred_region
          %p982 = scmp.lt.s32.totalorder %s32, 0
          %s983 = scalar_select %p982, %s32, 0
          %p984 = scmp.lt.s32.totalorder %s33, 1
          %s985 = scalar_select %p984, %s33, 1
          %s986 = smul.addr %s985, 4
          %s987 = smul.addr %s983, 8
          %s988 = sadd.s32 %s986, %s987
          %s989 = smul.addr %s988, 8
          %s990 = scalar_lea.vmem %s6, %s989
        $region68: #{tpu_custom_call.1} parent=55 // pred_fallthru
          _
      $region56: #{tpu_custom_call.1} parent=5 // pred_fallthru
        _
    $region6: #{tpu_custom_call.1} parent=1 // loop_footer
      %s23 = sadd.s32 1, %s19
    $region7: #{tpu_custom_call.1} parent=1 // loop_footer_branch
      %18 = sbr.rel target = $region3
    $region8: #{tpu_custom_call.1} parent=1 // loop_exit
      _
    %991 = vsyncpa [#allocation3], 1
    %s992 = scalar_lea.sflag [#allocation3], 1
    %993 = vsyncpa %s992, 1
    %994 = vsyncpa [#allocation5], 1
    %s995 = scalar_lea.sflag [#allocation5], 1
    %996 = vsyncpa %s995, 1

</llo_original>
